<compile_context>
chip_gen: v7x
topology: tpu7x:2x2x1
jax: 0.10.0
libtpu: 0.0.40
codegen_flags: <defaults>
</compile_context>

<pallas_src>
import functools

import jax
import jax.numpy as jnp
from jax import lax
from jax.experimental import pallas as pl
from jax.experimental.pallas import tpu as pltpu


def _round_up(x, m):
    return (x + m - 1) // m * m


def _infonce_kernel(q_ref, kfull_ref, kdiag_ref, neg_ref, out_ref,
                    m_sc, l_sc, diag_sc, qs_sc, *,
                    temp, n_neg_valid, tn, mxu_dtype):
    """Streaming InfoNCE over queue tiles with an online logsumexp.

    q_ref     : (TB, Dp)  query rows of this B-tile (mxu_dtype)
    kfull_ref : (B,  Dp)  all keys (positive columns of the logits)
    kdiag_ref : (TB, Dp)  keys rows aligned with this query tile (for the diagonal)
    neg_ref   : (TN, Dp)  current queue tile (streamed along grid axis 1)
    out_ref   : (TB, 1)   per-row loss  (logsumexp - positive logit)
    scratch   : m_sc/l_sc/diag_sc (TB,1) f32 ; qs_sc (TB,Dp) mxu_dtype
    """
    j = pl.program_id(1)
    nj = pl.num_programs(1)
    eps = 1e-8
    eps2 = eps * eps
    inv_temp = jnp.float32(1.0 / temp)
    dimnums = (((1,), (1,)), ((), ()))  # contract last dims: q @ c^T

    # ---- init on the first queue tile: scale q once, fold keys into the running LSE ----
    @pl.when(j == 0)
    def _init():
        q = q_ref[...].astype(jnp.float32)
        inv_q = lax.rsqrt(jnp.maximum(jnp.sum(q * q, axis=-1, keepdims=True), eps2))
        q_scaled = q * (inv_q * inv_temp)                 # fold 1/temp into q rows
        qs_sc[...] = q_scaled.astype(mxu_dtype)

        # Positive (diagonal) logit: rowwise q·keys on (TB, D) — no (B, M) iota/mask pass.
        kd = kdiag_ref[...].astype(jnp.float32)
        inv_kd = lax.rsqrt(jnp.maximum(jnp.sum(kd * kd, axis=-1, keepdims=True), eps2))
        diag_sc[...] = jnp.sum(q_scaled * (kd * inv_kd), axis=-1, keepdims=True)

        # Positive block of the logits (all B key columns) seeds the running max/sum.
        kf = kfull_ref[...].astype(jnp.float32)
        inv_kf = lax.rsqrt(jnp.maximum(jnp.sum(kf * kf, axis=-1, keepdims=True), eps2))
        kf_s = (kf * inv_kf).astype(mxu_dtype)
        s_pos = lax.dot_general(qs_sc[...], kf_s, dimnums,
                                preferred_element_type=jnp.float32)      # (TB, B)
        m0 = jnp.max(s_pos, axis=-1, keepdims=True)
        m_sc[...] = m0
        l_sc[...] = jnp.sum(jnp.exp(s_pos - m0), axis=-1, keepdims=True)

    # ---- every step: one queue tile, normalize rows, matmul, online LSE update ----
    c = neg_ref[...].astype(jnp.float32)
    inv_c = lax.rsqrt(jnp.maximum(jnp.sum(c * c, axis=-1, keepdims=True), eps2))
    c_s = (c * inv_c).astype(mxu_dtype)
    s_neg = lax.dot_general(qs_sc[...], c_s, dimnums,
                            preferred_element_type=jnp.float32)          # (TB, TN)

    # Mask queue rows that are pure padding (global column >= n_neg_valid).
    col = j * tn + lax.broadcasted_iota(jnp.int32, s_neg.shape, 1)
    s_neg = jnp.where(col < n_neg_valid, s_neg, -jnp.inf)

    m_prev = m_sc[...]
    m_new = jnp.maximum(m_prev, jnp.max(s_neg, axis=-1, keepdims=True))
    alpha = jnp.exp(m_prev - m_new)
    l_sc[...] = alpha * l_sc[...] + jnp.sum(jnp.exp(s_neg - m_new), axis=-1, keepdims=True)
    m_sc[...] = m_new

    # ---- finalize on the last queue tile ----
    @pl.when(j == nj - 1)
    def _finalize():
        lse = m_sc[...] + jnp.log(l_sc[...])
        out_ref[...] = lse - diag_sc[...]


def infonce_with_queue(query, keys, queue, temp=0.05,
                       mxu_dtype=jnp.bfloat16, tn=512, tb=256):
    """Pallas equivalent of InfoNCEWithQueue.forward(query, keys, queue)."""
    B, D = query.shape
    b, l, d = queue.shape
    assert d == D and keys.shape == (B, D)
    n_neg = b * l
    assert n_neg > 0
    neg = queue.reshape(n_neg, D)

    # Pad the feature dim to the 128-lane width (zero-pad is norm/dot neutral).
    d_pad = _round_up(D, 128)
    if d_pad != D:
        fpad = [(0, 0), (0, d_pad - D)]
        query = jnp.pad(query, fpad)
        keys = jnp.pad(keys, fpad)
        neg = jnp.pad(neg, fpad)

    # Queue-row tile (streamed reduction axis).
    tn_eff = min(tn, _round_up(n_neg, 8))
    m_pad = _round_up(n_neg, tn_eff)
    if m_pad != n_neg:
        neg = jnp.pad(neg, [(0, m_pad - n_neg), (0, 0)])
    n_qt = m_pad // tn_eff

    # Query-row tile ("parallel" axis -> shardable over v7x's 2 TensorCores).
    tb_eff = tb if (B > tb and B % tb == 0) else B
    n_bt = B // tb_eff

    # Cast MXU operands once in the wrapper (bf16 halves HBM traffic, full-rate MXU).
    query_p = query.astype(mxu_dtype)
    keys_p = keys.astype(mxu_dtype)
    neg_p = neg.astype(mxu_dtype)

    kernel = functools.partial(_infonce_kernel, temp=temp, n_neg_valid=n_neg,
                               tn=tn_eff, mxu_dtype=mxu_dtype)

    itemsize = jnp.dtype(mxu_dtype).itemsize
    cost = pl.CostEstimate(
        flops=2 * B * (B + m_pad) * d_pad,
        transcendentals=B * (B + m_pad),
        bytes_accessed=(2 * B * d_pad + B * d_pad + m_pad * d_pad) * itemsize + B * 4,
    )

    grid_spec = pltpu.PrefetchScalarGridSpec(
        num_scalar_prefetch=0,
        grid=(n_bt, n_qt),
        in_specs=[
            pl.BlockSpec((tb_eff, d_pad), lambda i, j: (i, 0)),   # query tile
            pl.BlockSpec((B, d_pad), lambda i, j: (0, 0)),        # all keys (pos columns)
            pl.BlockSpec((tb_eff, d_pad), lambda i, j: (i, 0)),   # keys rows for the diagonal
            pl.BlockSpec((tn_eff, d_pad), lambda i, j: (j, 0)),   # streamed queue tile
        ],
        out_specs=pl.BlockSpec((tb_eff, 1), lambda i, j: (i, 0)),
        scratch_shapes=[
            pltpu.VMEM((tb_eff, 1), jnp.float32),   # running max
            pltpu.VMEM((tb_eff, 1), jnp.float32),   # running sum
            pltpu.VMEM((tb_eff, 1), jnp.float32),   # positive (diagonal) logit
            pltpu.VMEM((tb_eff, d_pad), mxu_dtype), # pre-scaled query tile
        ],
    )

    row_loss = pl.pallas_call(
        kernel,
        out_shape=jax.ShapeDtypeStruct((B, 1), jnp.float32),
        grid_spec=grid_spec,
        compiler_params=pltpu.CompilerParams(
            dimension_semantics=("parallel", "arbitrary"),
            vmem_limit_bytes=32 * 1024 * 1024,
        ),
        cost_estimate=cost,
    )(query_p, keys_p, keys_p, neg_p)

    return jnp.sum(row_loss) / B   # CrossEntropyLoss mean reduction


def _reference(query, keys, queue, temp=0.05):
    """Pure-JAX reference mirroring the PyTorch forward."""
    eps = 1e-8
    b, l, d = queue.shape
    cand = jnp.concatenate([keys, queue.reshape(b * l, d)], axis=0)
    qn = jnp.linalg.norm(query, axis=-1, keepdims=True)
    cn = jnp.linalg.norm(cand, axis=-1, keepdims=True)
    sim = (query @ cand.T) / jnp.maximum(qn * cn.T, eps) / temp
    B = query.shape[0]
    logz = jax.scipy.special.logsumexp(sim, axis=-1)
    return jnp.mean(logz - sim[jnp.arange(B), jnp.arange(B)])


if __name__ == "__main__":
    key = jax.random.PRNGKey(0)
    k1, k2, k3, k4 = jax.random.split(key, 4)

    B, D = 8, 32          # batch, hidden
    qb, ql = 4, 8         # queue: (qb, ql, D) -> 32 negatives

    query = jax.random.normal(k1, (B, D), dtype=jnp.float32)
    keys = jax.random.normal(k2, (B, D), dtype=jnp.float32)
    queue = jax.random.normal(k3, (qb, ql, D), dtype=jnp.float32)

    ref = _reference(query, keys, queue, temp=0.05)

    # Default path: bf16 MXU operands (loose tolerance accounts for bf16 rounding).
    loss_bf16 = infonce_with_queue(query, keys, queue, temp=0.05)
    jax.block_until_ready(loss_bf16)
    assert jnp.allclose(loss_bf16, ref, rtol=6e-2, atol=6e-2), (loss_bf16, ref)

    # f32 operands: tighter numerics check (tolerance still covers default TPU matmul precision).
    loss_f32 = infonce_with_queue(query, keys, queue, temp=0.05, mxu_dtype=jnp.float32)
    jax.block_until_ready(loss_f32)
    assert jnp.allclose(loss_f32, ref, rtol=2e-2, atol=2e-2), (loss_f32, ref)

    # Exercise the multi-tile streaming logsumexp path (4 queue tiles).
    loss_tiled = infonce_with_queue(query, keys, queue, temp=0.05,
                                    mxu_dtype=jnp.float32, tn=8)
    jax.block_until_ready(loss_tiled)
    assert jnp.allclose(loss_tiled, ref, rtol=2e-2, atol=2e-2), (loss_tiled, ref)

    # Exercise row padding + masking (15 negatives, tile of 8 -> 2 tiles, 1 padded row).
    queue2 = jax.random.normal(k4, (3, 5, D), dtype=jnp.float32)
    ref2 = _reference(query, keys, queue2, temp=0.05)
    loss2 = infonce_with_queue(query, keys, queue2, temp=0.05,
                               mxu_dtype=jnp.float32, tn=8)
    jax.block_until_ready(loss2)
    assert jnp.allclose(loss2, ref2, rtol=2e-2, atol=2e-2), (loss2, ref2)

    print("KERNEL_OK")
</pallas_src>

<mosaic_0001>
module attributes {stable_mosaic.version = 11 : i64} {
  func.func @_infonce_kernel(%arg0: i32, %arg1: i32, %arg2: memref<8x128xbf16, #tpu.memory_space<vmem>>, %arg3: memref<8x128xbf16, #tpu.memory_space<vmem>>, %arg4: memref<8x128xbf16, #tpu.memory_space<vmem>>, %arg5: memref<32x128xbf16, #tpu.memory_space<vmem>>, %arg6: memref<8x1xf32, #tpu.memory_space<vmem>>, %arg7: memref<8x1xf32, #tpu.memory_space<vmem>>, %arg8: memref<8x1xf32, #tpu.memory_space<vmem>>, %arg9: memref<8x1xf32, #tpu.memory_space<vmem>>, %arg10: memref<8x128xbf16, #tpu.memory_space<vmem>>) attributes {dimension_semantics = [#tpu.dimension_semantics<parallel>, #tpu.dimension_semantics<arbitrary>], iteration_bounds = array<i64: 1, 1>, scalar_prefetch = 0 : i64, scratch_operands = 4 : i64, tpu.core_type = #tpu.core_type<tc>, window_params = [{transform_indices = @transform_0, window_bounds = array<i64: 8, 128>}, {pipeline_mode = #tpu.pipeline_mode<synchronous>, transform_indices = @transform_1, window_bounds = array<i64: 8, 128>}, {transform_indices = @transform_2, window_bounds = array<i64: 8, 128>}, {transform_indices = @transform_3, window_bounds = array<i64: 32, 128>}, {transform_indices = @transform_4, window_bounds = array<i64: 8, 1>}]} {
    %c0_i32 = arith.constant 0 : i32
    %0 = arith.cmpi eq, %arg1, %c0_i32 : i32
    %1 = arith.extui %0 : i1 to i32
    %cst = arith.constant 2.000000e+01 : f32
    %c0_i32_0 = arith.constant 0 : i32
    %2 = arith.cmpi ne, %1, %c0_i32_0 : i32
    scf.if %2 {
      %c0_21 = arith.constant 0 : index
      %c0_22 = arith.constant 0 : index
      %43 = vector.load %arg2[%c0_21, %c0_22] : memref<8x128xbf16, #tpu.memory_space<vmem>>, vector<8x128xbf16>
      %44 = arith.extf %43 : vector<8x128xbf16> to vector<8x128xf32>
      %45 = arith.mulf %44, %44 : vector<8x128xf32>
      %cst_23 = arith.constant dense<0.000000e+00> : vector<8xf32>
      %46 = vector.multi_reduction <add>, %45, %cst_23 [1] : vector<8x128xf32> to vector<8xf32>
      %47 = vector.shape_cast %46 : vector<8xf32> to vector<8x1xf32>
      %cst_24 = arith.constant 1.000000e-16 : f32
      %48 = vector.broadcast %cst_24 : f32 to vector<8x1xf32>
      %49 = arith.maximumf %47, %48 : vector<8x1xf32>
      %50 = math.rsqrt %49 : vector<8x1xf32>
      %51 = vector.broadcast %cst : f32 to vector<8x1xf32>
      %52 = arith.mulf %50, %51 : vector<8x1xf32>
      %53 = vector.broadcast %52 : vector<8x1xf32> to vector<8x128xf32>
      %54 = arith.mulf %44, %53 : vector<8x128xf32>
      %55 = arith.truncf %54 : vector<8x128xf32> to vector<8x128xbf16>
      %c0_25 = arith.constant 0 : index
      %c0_26 = arith.constant 0 : index
      %56 = vector.load %arg10[%c0_25, %c0_26] : memref<8x128xbf16, #tpu.memory_space<vmem>>, vector<8x128xbf16>
      tpu.vector_store %arg10[%c0_25, %c0_26], %55 {strides = array<i32>} : memref<8x128xbf16, #tpu.memory_space<vmem>>, vector<8x128xbf16>,
      %c0_27 = arith.constant 0 : index
      %c0_28 = arith.constant 0 : index
      %57 = vector.load %arg4[%c0_27, %c0_28] : memref<8x128xbf16, #tpu.memory_space<vmem>>, vector<8x128xbf16>
      %58 = arith.extf %57 : vector<8x128xbf16> to vector<8x128xf32>
      %59 = arith.mulf %58, %58 : vector<8x128xf32>
      %cst_29 = arith.constant dense<0.000000e+00> : vector<8xf32>
      %60 = vector.multi_reduction <add>, %59, %cst_29 [1] : vector<8x128xf32> to vector<8xf32>
      %61 = vector.shape_cast %60 : vector<8xf32> to vector<8x1xf32>
      %cst_30 = arith.constant 1.000000e-16 : f32
      %62 = vector.broadcast %cst_30 : f32 to vector<8x1xf32>
      %63 = arith.maximumf %61, %62 : vector<8x1xf32>
      %64 = math.rsqrt %63 : vector<8x1xf32>
      %65 = vector.broadcast %64 : vector<8x1xf32> to vector<8x128xf32>
      %66 = arith.mulf %58, %65 : vector<8x128xf32>
      %67 = arith.mulf %54, %66 : vector<8x128xf32>
      %cst_31 = arith.constant dense<0.000000e+00> : vector<8xf32>
      %68 = vector.multi_reduction <add>, %67, %cst_31 [1] : vector<8x128xf32> to vector<8xf32>
      %69 = vector.shape_cast %68 : vector<8xf32> to vector<8x1xf32>
      %c0_32 = arith.constant 0 : index
      %c0_33 = arith.constant 0 : index
      %70 = vector.load %arg9[%c0_32, %c0_33] : memref<8x1xf32, #tpu.memory_space<vmem>>, vector<8x1xf32>
      tpu.vector_store %arg9[%c0_32, %c0_33], %69 {strides = array<i32>} : memref<8x1xf32, #tpu.memory_space<vmem>>, vector<8x1xf32>,
      %c0_34 = arith.constant 0 : index
      %c0_35 = arith.constant 0 : index
      %71 = vector.load %arg3[%c0_34, %c0_35] : memref<8x128xbf16, #tpu.memory_space<vmem>>, vector<8x128xbf16>
      %72 = arith.extf %71 : vector<8x128xbf16> to vector<8x128xf32>
      %73 = arith.mulf %72, %72 : vector<8x128xf32>
      %cst_36 = arith.constant dense<0.000000e+00> : vector<8xf32>
      %74 = vector.multi_reduction <add>, %73, %cst_36 [1] : vector<8x128xf32> to vector<8xf32>
      %75 = vector.shape_cast %74 : vector<8xf32> to vector<8x1xf32>
      %cst_37 = arith.constant 1.000000e-16 : f32
      %76 = vector.broadcast %cst_37 : f32 to vector<8x1xf32>
      %77 = arith.maximumf %75, %76 : vector<8x1xf32>
      %78 = math.rsqrt %77 : vector<8x1xf32>
      %79 = vector.broadcast %78 : vector<8x1xf32> to vector<8x128xf32>
      %80 = arith.mulf %72, %79 : vector<8x128xf32>
      %81 = arith.truncf %80 : vector<8x128xf32> to vector<8x128xbf16>
      %c0_38 = arith.constant 0 : index
      %c0_39 = arith.constant 0 : index
      %82 = vector.load %arg10[%c0_38, %c0_39] : memref<8x128xbf16, #tpu.memory_space<vmem>>, vector<8x128xbf16>
      %cst_40 = arith.constant dense<0.000000e+00> : vector<8x8xf32>
      %83 = tpu.matmul %82, %81, %cst_40 {dimension_numbers = #tpu.dot_dimension_numbers<[1], [1], [0], [0], [0, 0, 1, 0], [], []>} : vector<8x128xbf16>, vector<8x128xbf16>, vector<8x8xf32> -> vector<8x8xf32>
      %cst_41 = arith.constant dense<0xFF800000> : vector<8xf32>
      %84 = vector.multi_reduction <maximumf>, %83, %cst_41 [1] : vector<8x8xf32> to vector<8xf32>
      %85 = vector.shape_cast %84 : vector<8xf32> to vector<8x1xf32>
      %c0_42 = arith.constant 0 : index
      %c0_43 = arith.constant 0 : index
      %86 = vector.load %arg7[%c0_42, %c0_43] : memref<8x1xf32, #tpu.memory_space<vmem>>, vector<8x1xf32>
      tpu.vector_store %arg7[%c0_42, %c0_43], %85 {strides = array<i32>} : memref<8x1xf32, #tpu.memory_space<vmem>>, vector<8x1xf32>,
      %87 = vector.broadcast %85 : vector<8x1xf32> to vector<8x8xf32>
      %88 = arith.subf %83, %87 : vector<8x8xf32>
      %89 = math.exp %88 : vector<8x8xf32>
      %cst_44 = arith.constant dense<0.000000e+00> : vector<8xf32>
      %90 = vector.multi_reduction <add>, %89, %cst_44 [1] : vector<8x8xf32> to vector<8xf32>
      %91 = vector.shape_cast %90 : vector<8xf32> to vector<8x1xf32>
      %c0_45 = arith.constant 0 : index
      %c0_46 = arith.constant 0 : index
      %92 = vector.load %arg8[%c0_45, %c0_46] : memref<8x1xf32, #tpu.memory_space<vmem>>, vector<8x1xf32>
      tpu.vector_store %arg8[%c0_45, %c0_46], %91 {strides = array<i32>} : memref<8x1xf32, #tpu.memory_space<vmem>>, vector<8x1xf32>,
    } else {
    }
    %c0 = arith.constant 0 : index
    %c0_1 = arith.constant 0 : index
    %3 = vector.load %arg5[%c0, %c0_1] : memref<32x128xbf16, #tpu.memory_space<vmem>>, vector<32x128xbf16>
    %4 = arith.extf %3 : vector<32x128xbf16> to vector<32x128xf32>
    %5 = arith.mulf %4, %4 : vector<32x128xf32>
    %cst_2 = arith.constant dense<0.000000e+00> : vector<32xf32>
    %6 = vector.multi_reduction <add>, %5, %cst_2 [1] : vector<32x128xf32> to vector<32xf32>
    %7 = vector.shape_cast %6 : vector<32xf32> to vector<32x1xf32>
    %cst_3 = arith.constant 1.000000e-16 : f32
    %8 = vector.broadcast %cst_3 : f32 to vector<32x1xf32>
    %9 = arith.maximumf %7, %8 : vector<32x1xf32>
    %10 = math.rsqrt %9 : vector<32x1xf32>
    %11 = vector.broadcast %10 : vector<32x1xf32> to vector<32x128xf32>
    %12 = arith.mulf %4, %11 : vector<32x128xf32>
    %13 = arith.truncf %12 : vector<32x128xf32> to vector<32x128xbf16>
    %c0_4 = arith.constant 0 : index
    %c0_5 = arith.constant 0 : index
    %14 = vector.load %arg10[%c0_4, %c0_5] : memref<8x128xbf16, #tpu.memory_space<vmem>>, vector<8x128xbf16>
    %cst_6 = arith.constant dense<0.000000e+00> : vector<8x32xf32>
    %15 = tpu.matmul %14, %13, %cst_6 {dimension_numbers = #tpu.dot_dimension_numbers<[1], [1], [0], [0], [0, 0, 1, 0], [], []>} : vector<8x128xbf16>, vector<32x128xbf16>, vector<8x32xf32> -> vector<8x32xf32>
    %c32_i32 = arith.constant 32 : i32
    %16 = arith.muli %arg1, %c32_i32 : i32
    %17 = tpu.iota {dimensions = array<i32: 1>} : vector<8x32xi32>
    %18 = vector.broadcast %16 : i32 to vector<8x32xi32>
    %19 = arith.addi %18, %17 : vector<8x32xi32>
    %c32_i32_7 = arith.constant 32 : i32
    %20 = vector.broadcast %c32_i32_7 : i32 to vector<8x32xi32>
    %21 = arith.cmpi slt, %19, %20 : vector<8x32xi32>
    %cst_8 = arith.constant 0xFF800000 : f32
    %22 = vector.broadcast %cst_8 : f32 to vector<8x32xf32>
    %23 = arith.select %21, %15, %22 : vector<8x32xi1>, vector<8x32xf32>
    %c0_9 = arith.constant 0 : index
    %c0_10 = arith.constant 0 : index
    %24 = vector.load %arg7[%c0_9, %c0_10] : memref<8x1xf32, #tpu.memory_space<vmem>>, vector<8x1xf32>
    %cst_11 = arith.constant dense<0xFF800000> : vector<8xf32>
    %25 = vector.multi_reduction <maximumf>, %23, %cst_11 [1] : vector<8x32xf32> to vector<8xf32>
    %26 = vector.shape_cast %25 : vector<8xf32> to vector<8x1xf32>
    %27 = arith.maximumf %24, %26 : vector<8x1xf32>
    %28 = arith.subf %24, %27 : vector<8x1xf32>
    %29 = math.exp %28 : vector<8x1xf32>
    %c0_12 = arith.constant 0 : index
    %c0_13 = arith.constant 0 : index
    %30 = vector.load %arg8[%c0_12, %c0_13] : memref<8x1xf32, #tpu.memory_space<vmem>>, vector<8x1xf32>
    %31 = arith.mulf %29, %30 : vector<8x1xf32>
    %32 = vector.broadcast %27 : vector<8x1xf32> to vector<8x32xf32>
    %33 = arith.subf %23, %32 : vector<8x32xf32>
    %34 = math.exp %33 : vector<8x32xf32>
    %cst_14 = arith.constant dense<0.000000e+00> : vector<8xf32>
    %35 = vector.multi_reduction <add>, %34, %cst_14 [1] : vector<8x32xf32> to vector<8xf32>
    %36 = vector.shape_cast %35 : vector<8xf32> to vector<8x1xf32>
    %37 = arith.addf %31, %36 : vector<8x1xf32>
    %c0_15 = arith.constant 0 : index
    %c0_16 = arith.constant 0 : index
    %38 = vector.load %arg8[%c0_15, %c0_16] : memref<8x1xf32, #tpu.memory_space<vmem>>, vector<8x1xf32>
    tpu.vector_store %arg8[%c0_15, %c0_16], %37 {strides = array<i32>} : memref<8x1xf32, #tpu.memory_space<vmem>>, vector<8x1xf32>,
    %c0_17 = arith.constant 0 : index
    %c0_18 = arith.constant 0 : index
    %39 = vector.load %arg7[%c0_17, %c0_18] : memref<8x1xf32, #tpu.memory_space<vmem>>, vector<8x1xf32>
    tpu.vector_store %arg7[%c0_17, %c0_18], %27 {strides = array<i32>} : memref<8x1xf32, #tpu.memory_space<vmem>>, vector<8x1xf32>,
    %c0_i32_19 = arith.constant 0 : i32
    %40 = arith.cmpi eq, %arg1, %c0_i32_19 : i32
    %41 = arith.extui %40 : i1 to i32
    %c0_i32_20 = arith.constant 0 : i32
    %42 = arith.cmpi ne, %41, %c0_i32_20 : i32
    scf.if %42 {
      %c0_21 = arith.constant 0 : index
      %c0_22 = arith.constant 0 : index
      %43 = vector.load %arg7[%c0_21, %c0_22] : memref<8x1xf32, #tpu.memory_space<vmem>>, vector<8x1xf32>
      %c0_23 = arith.constant 0 : index
      %c0_24 = arith.constant 0 : index
      %44 = vector.load %arg8[%c0_23, %c0_24] : memref<8x1xf32, #tpu.memory_space<vmem>>, vector<8x1xf32>
      %45 = math.log %44 : vector<8x1xf32>
      %46 = arith.addf %43, %45 : vector<8x1xf32>
      %c0_25 = arith.constant 0 : index
      %c0_26 = arith.constant 0 : index
      %47 = vector.load %arg9[%c0_25, %c0_26] : memref<8x1xf32, #tpu.memory_space<vmem>>, vector<8x1xf32>
      %48 = arith.subf %46, %47 : vector<8x1xf32>
      %c0_27 = arith.constant 0 : index
      %c0_28 = arith.constant 0 : index
      %49 = vector.load %arg6[%c0_27, %c0_28] : memref<8x1xf32, #tpu.memory_space<vmem>>, vector<8x1xf32>
      tpu.vector_store %arg6[%c0_27, %c0_28], %48 {strides = array<i32>} : memref<8x1xf32, #tpu.memory_space<vmem>>, vector<8x1xf32>,
    } else {
    }
    return
  }
  func.func @transform_0(%arg0: i32, %arg1: i32) -> (i32, i32) {
    %c0_i32 = arith.constant 0 : i32
    %c0_i32_0 = arith.constant 0 : i32
    return %arg0, %c0_i32 : i32, i32
  }
  func.func @transform_1(%arg0: i32, %arg1: i32) -> (i32, i32) {
    %c0_i32 = arith.constant 0 : i32
    %c0_i32_0 = arith.constant 0 : i32
    %c0_i32_1 = arith.constant 0 : i32
    return %c0_i32, %c0_i32_0 : i32, i32
  }
  func.func @transform_2(%arg0: i32, %arg1: i32) -> (i32, i32) {
    %c0_i32 = arith.constant 0 : i32
    %c0_i32_0 = arith.constant 0 : i32
    return %arg0, %c0_i32 : i32, i32
  }
  func.func @transform_3(%arg0: i32, %arg1: i32) -> (i32, i32) {
    %c0_i32 = arith.constant 0 : i32
    %c0_i32_0 = arith.constant 0 : i32
    return %arg1, %c0_i32 : i32, i32
  }
  func.func @transform_4(%arg0: i32, %arg1: i32) -> (i32, i32) {
    %c0_i32 = arith.constant 0 : i32
    %c0_i32_0 = arith.constant 0 : i32
    return %arg0, %c0_i32 : i32, i32
  }
}

</mosaic_0001>

<llo_original>
// kernel: tpu_custom_call.1
$region0: #{tpu_custom_call.1}
  #allocation0 [shape = 'u32[]', space=smem, size = 0x4, offset = 0x4, fixed_abs, tag = 'smem constant byte address 0x4 - core index']
  #allocation1 [shape = 'u32[144,128]{1,0:T(1,128)}', space=vmem, size = 0x12000, scoped, tag = 'internal scratch']
  #allocation2 [shape = 'f32[8,1]{1,0:T(8,128)}', space=vmem, size = 0x1000, scoped, tag = 'scratch operand']
  #allocation3 [shape = 'f32[8,1]{1,0:T(8,128)}', space=vmem, size = 0x1000, scoped, tag = 'scratch operand']
  #allocation4 [shape = 'f32[8,1]{1,0:T(8,128)}', space=vmem, size = 0x1000, scoped, tag = 'scratch operand']
  #allocation5 [shape = 'bf16[8,128]{1,0:T(8,128)(2,1)}', space=vmem, size = 0x800, scoped, tag = 'scratch operand']
  %s0 = inlined_call_operand.hbm [shape: bf16[8,128], index: 0, kind: input, shape index: {}]
  %s1 = inlined_call_operand.hbm [shape: bf16[8,128], index: 1, kind: input, shape index: {}]
  %s2 = inlined_call_operand.vmem [shape: bf16[8,128], index: 2, kind: input, shape index: {}]
  %s3 = inlined_call_operand.hbm [shape: bf16[32,128], index: 3, kind: input, shape index: {}]
  %s4 = inlined_call_operand.vmem [shape: f32[8,1], index: 4, kind: output, shape index: {}]
  %s5 = sld [smem:[#allocation0]]
  $region46: #{tpu_custom_call.1} parent=0
    _
  %s7 = ssub.s32 1, %s5
  %s8 = scalar_select 0, %s7, %s5
  $region1: #{tpu_custom_call.1} parent=0
    #allocation6 [shape = 'u8[2048]{0}', space=vmem, size = 0x800, scoped, tag = 'input window, operand 0, single buffered']
    #allocation7 [shape = 's32[1]{0}', space=sflag, size = 0x4, scoped, tag = 'scoped memory for tpu_custom_call.1']
    #allocation8 [shape = 'u8[2048]{0}', space=vmem, size = 0x800, scoped, tag = 'input window, operand 1, single buffered']
    #allocation9 [shape = 's32[1]{0}', space=sflag, size = 0x4, scoped, tag = 'scoped memory for tpu_custom_call.1']
    #allocation10 [shape = 'u8[8192]{0}', space=vmem, size = 0x2000, scoped, tag = 'input window, operand 3, single buffered']
    %9 = vsyncpa [#allocation7], 0
    %10 = vsyncpa [#allocation9], 0
    // Predicated region
    $region2: #{tpu_custom_call.1} parent=1 // pred_check
      _
    $region3: #{tpu_custom_call.1} parent=1 // pred_check_branch
      %12 = sbr.rel (0) target = $region5
    $region4: #{tpu_custom_call.1} parent=1 // pred_region
      %s14 = ssub.s32 64, 64
      %15 = vsyncadd [#allocation7], %s14
      %s17 = sshll.u32 [#allocation6], 4
      %s18 = int_to_ptr.vmem [resolvable:$true] %s17
      %20 = dma.hbm_to_vmem [thread:$0]  %s0, 64, %s18, [#allocation7]
    $region5: #{tpu_custom_call.1} parent=1 // pred_fallthru
      _
    // Predicated region
    $region6: #{tpu_custom_call.1} parent=1 // pred_check
      _
    $region7: #{tpu_custom_call.1} parent=1 // pred_check_branch
      %22 = sbr.rel (0) target = $region9
    $region8: #{tpu_custom_call.1} parent=1 // pred_region
      %s24 = ssub.s32 64, 64
      %25 = vsyncadd [#allocation9], %s24
      %s27 = sshll.u32 [#allocation8], 4
      %s28 = int_to_ptr.vmem [resolvable:$true] %s27
      %30 = dma.hbm_to_vmem [thread:$0]  %s1, 64, %s28, [#allocation9]
    $region9: #{tpu_custom_call.1} parent=1 // pred_fallthru
      _
    // Predicated region
    $region10: #{tpu_custom_call.1} parent=1 // pred_check
      _
    $region11: #{tpu_custom_call.1} parent=1 // pred_check_branch
      %32 = sbr.rel (0) target = $region13
    $region12: #{tpu_custom_call.1} parent=1 // pred_region
      _
    $region13: #{tpu_custom_call.1} parent=1 // pred_fallthru
      _
    // Predicated region
    $region14: #{tpu_custom_call.1} parent=1 // pred_check
      _
    $region15: #{tpu_custom_call.1} parent=1 // pred_check_branch
      %34 = sbr.rel (0) target = $region17
    $region16: #{tpu_custom_call.1} parent=1 // pred_region
      %s36 = ssub.s32 256, 256
      %37 = vsyncadd [#allocation9], %s36
      %s38 = sshll.u32 [#allocation10], 4
      %s39 = int_to_ptr.vmem [resolvable:$true] %s38
      %44 = dma.hbm_to_vmem [thread:$0]  %s3, 256, %s39, [#allocation9], 64, 64, 4
    $region17: #{tpu_custom_call.1} parent=1 // pred_fallthru
      _
    // Predicated region
    $region18: #{tpu_custom_call.1} parent=1 // pred_check
      _
    $region19: #{tpu_custom_call.1} parent=1 // pred_check_branch
      %46 = sbr.rel (0) target = $region21
    $region20: #{tpu_custom_call.1} parent=1 // pred_region
      %47 = dma.done [#allocation7], 64
    $region21: #{tpu_custom_call.1} parent=1 // pred_fallthru
      _
    // Predicated region
    $region22: #{tpu_custom_call.1} parent=1 // pred_check
      _
    $region23: #{tpu_custom_call.1} parent=1 // pred_check_branch
      %49 = sbr.rel (0) target = $region25
    $region24: #{tpu_custom_call.1} parent=1 // pred_region
      %50 = dma.done [#allocation9], 64
    $region25: #{tpu_custom_call.1} parent=1 // pred_fallthru
      _
    // Predicated region
    $region26: #{tpu_custom_call.1} parent=1 // pred_check
      _
    $region27: #{tpu_custom_call.1} parent=1 // pred_check_branch
      %52 = sbr.rel (0) target = $region29
    $region28: #{tpu_custom_call.1} parent=1 // pred_region
      %53 = dma.done [#allocation9], 256
    $region29: #{tpu_custom_call.1} parent=1 // pred_fallthru
      _
    %p55 = scmp.eq.s32.totalorder 0, 0
    // Predicated region
    $region30: #{tpu_custom_call.1} parent=1 // pred_check
      %p56 = pneg %p55
    $region31: #{tpu_custom_call.1} parent=1 // pred_check_branch
      %58 = sbr.rel (%p56) target = $region33
    $region32: #{tpu_custom_call.1} parent=1 // pred_region
      %v59 = vld [vmem:[#allocation6] sm:$0xf]
      %v60 = vunpack.c.l.bf16 %v59
      %v61 = vmul.f32 %v60, %v60
      %62 = vadd.xlane.f32.xlu0 %v61
      %v63 = vpop.xlane.xlu0 %62
      %v64 = vmax.f32 %v63, 1e-16
      %v65 = vrsqrt.pop %v64
      %v66 = vmul.f32 %v65, 20.0
      %v67 = vmul.f32 %v60, %v66
      %v68 = vpack.c.bf16 %v67, %v67
      %69 = vst [vmem:[#allocation5] sm:$0xf] %v68
      %v70 = vld [vmem:[%s2] sm:$0xf]
      %v71 = vunpack.c.l.bf16 %v70
      %v72 = vmul.f32 %v71, %v71
      %73 = vadd.xlane.f32.xlu0 %v72
      %v74 = vpop.xlane.xlu0 %73
      %v75 = vmax.f32 %v74, 1e-16
      %v76 = vrsqrt.pop %v75
      %v77 = vmul.f32 %v71, %v76
      %v78 = vmul.f32 %v67, %v77
      %79 = vadd.xlane.f32.xlu0 %v78
      %v80 = vpop.xlane.xlu0 %79
      %vm81 = vcmask 7168
      %82 = vst.msk [vmem:[#allocation4] sm:$0xff] %vm81, %v80
      %v83 = vld [vmem:[#allocation8] sm:$0xf]
      %v84 = vunpack.c.l.bf16 %v83
      %v85 = vmul.f32 %v84, %v84
      %86 = vadd.xlane.f32.xlu0 %v85
      %v87 = vpop.xlane.xlu0 %86
      %v88 = vmax.f32 %v87, 1e-16
      %v89 = vrsqrt.pop %v88
      %v90 = vmul.f32 %v84, %v89
      %v91 = vpack.c.bf16 %v90, %v90
      %v92 = vld [vmem:[#allocation5] sm:$0xf]
      %93 = vmatprep.subr.bf16.mxu0 0
      %94 = vmatpush1.bf16.xpose.msra.mxu0 %v91
      %95 = vmatprep.subr.bf16.mxu0 0
      %96 = vmatpush1.bf16.xpose.msra.mxu0 0
      %97 = vmatprep.subr.bf16.mxu0 0
      %98 = vmatpush1.bf16.xpose.msra.mxu0 0
      %99 = vmatprep.subr.bf16.mxu0 0
      %100 = vmatpush1.bf16.xpose.msra.mxu0 0
      %101 = vmatprep.subr.bf16.mxu0 0
      %102 = vmatpush1.bf16.xpose.msra.mxu0 0
      %103 = vmatprep.subr.bf16.mxu0 0
      %104 = vmatpush1.bf16.xpose.msra.mxu0 0
      %105 = vmatprep.subr.bf16.mxu0 0
      %106 = vmatpush1.bf16.xpose.msra.mxu0 0
      %107 = vmatprep.subr.bf16.mxu0 0
      %108 = vmatpush1.bf16.xpose.msra.mxu0 0
      %109 = vmatprep.subr.bf16.mxu0 0
      %110 = vmatpush1.bf16.xpose.msra.mxu0 0
      %111 = vmatprep.subr.bf16.mxu0 0
      %112 = vmatpush1.bf16.xpose.msra.mxu0 0
      %113 = vmatprep.subr.bf16.mxu0 0
      %114 = vmatpush1.bf16.xpose.msra.mxu0 0
      %115 = vmatprep.subr.bf16.mxu0 0
      %116 = vmatpush1.bf16.xpose.msra.mxu0 0
      %117 = vmatprep.subr.bf16.mxu0 0
      %118 = vmatpush1.bf16.xpose.msra.mxu0 0
      %119 = vmatprep.subr.bf16.mxu0 0
      %120 = vmatpush1.bf16.xpose.msra.mxu0 0
      %121 = vmatprep.subr.bf16.mxu0 0
      %122 = vmatpush1.bf16.xpose.msra.mxu0 0
      %123 = vmatprep.subr.bf16.mxu0 0
      %124 = vmatpush1.bf16.xpose.msra.mxu0 0
      %125 = vmatprep.mubr.bf16.mxu0 0
      %126 = vmatmul.mubr.bf16.gmra.mrb[0].mxu0 %v92
      %v127 = vpop.f32.mrb[0].mxu0
      %v128 = vadd.f32 0.0, %v127
      %v129 = vpop.f32.mrb[0].mxu0
      %v130 = vpop.f32.mrb[0].mxu0
      %v131 = vpop.f32.mrb[0].mxu0
      %132 = vdwg.mxu0
      %vm133 = vcmask 64512
      %v134 = vsel %vm133, %v128, -inf
      %135 = vmax.xlane.f32.xlu0 %v134
      %v136 = vpop.xlane.xlu0 %135
      %137 = vst.msk [vmem:[#allocation2] sm:$0xff] %vm81, %v136
      %v138 = vsub.f32 %v128, %v136
      %v139 = vmul.f32 %v138, 1.442695
      %v140 = vpow.pop %v139
      %v141 = vsel %vm133, %v140, 0.0
      %142 = vadd.xlane.f32.xlu0 %v141
      %v143 = vpop.xlane.xlu0 %142
      %144 = vst.msk [vmem:[#allocation3] sm:$0xff] %vm81, %v143
    $region33: #{tpu_custom_call.1} parent=1 // pred_fallthru
      _
    %v145 = vld [vmem:[#allocation10] sm:$0xf]
    %v146 = vld [vmem:[#allocation10 + $0x4] sm:$0xf]
    %v147 = vld [vmem:[#allocation10 + $0x8] sm:$0xf]
    %v148 = vld [vmem:[#allocation10 + $0xc] sm:$0xf]
    %v149 = vunpack.c.l.bf16 %v145
    %v150 = vunpack.c.l.bf16 %v146
    %v151 = vunpack.c.l.bf16 %v147
    %v152 = vunpack.c.l.bf16 %v148
    %v153 = vmul.f32 %v149, %v149
    %v154 = vmul.f32 %v150, %v150
    %v155 = vmul.f32 %v151, %v151
    %v156 = vmul.f32 %v152, %v152
    %157 = vadd.xlane.f32.xlu0 %v153
    %v158 = vpop.xlane.xlu0 %157
    %159 = vadd.xlane.f32.xlu0 %v154
    %v160 = vpop.xlane.xlu0 %159
    %161 = vadd.xlane.f32.xlu0 %v155
    %v162 = vpop.xlane.xlu0 %161
    %163 = vadd.xlane.f32.xlu0 %v156
    %v164 = vpop.xlane.xlu0 %163
    %v165 = vmax.f32 %v158, 1e-16
    %v166 = vmax.f32 %v160, 1e-16
    %v167 = vmax.f32 %v162, 1e-16
    %v168 = vmax.f32 %v164, 1e-16
    %v169 = vrsqrt.pop %v165
    %v170 = vrsqrt.pop %v166
    %v171 = vrsqrt.pop %v167
    %v172 = vrsqrt.pop %v168
    %v173 = vmul.f32 %v149, %v169
    %v174 = vmul.f32 %v150, %v170
    %v175 = vmul.f32 %v151, %v171
    %v176 = vmul.f32 %v152, %v172
    %v177 = vpack.c.bf16 %v174, %v173
    %v178 = vpack.c.bf16 %v176, %v175
    %v179 = vld [vmem:[#allocation5] sm:$0xf]
    %180 = vmatprep.subr.bf16.mxu0 0
    %181 = vmatpush1.bf16.xpose.msra.mxu0 %v177
    %182 = vmatprep.subr.bf16.mxu0 0
    %183 = vmatpush1.bf16.xpose.msra.mxu0 %v178
    %184 = vmatprep.subr.bf16.mxu0 0
    %185 = vmatpush1.bf16.xpose.msra.mxu0 0
    %186 = vmatprep.subr.bf16.mxu0 0
    %187 = vmatpush1.bf16.xpose.msra.mxu0 0
    %188 = vmatprep.subr.bf16.mxu0 0
    %189 = vmatpush1.bf16.xpose.msra.mxu0 0
    %190 = vmatprep.subr.bf16.mxu0 0
    %191 = vmatpush1.bf16.xpose.msra.mxu0 0
    %192 = vmatprep.subr.bf16.mxu0 0
    %193 = vmatpush1.bf16.xpose.msra.mxu0 0
    %194 = vmatprep.subr.bf16.mxu0 0
    %195 = vmatpush1.bf16.xpose.msra.mxu0 0
    %196 = vmatprep.subr.bf16.mxu0 0
    %197 = vmatpush1.bf16.xpose.msra.mxu0 0
    %198 = vmatprep.subr.bf16.mxu0 0
    %199 = vmatpush1.bf16.xpose.msra.mxu0 0
    %200 = vmatprep.subr.bf16.mxu0 0
    %201 = vmatpush1.bf16.xpose.msra.mxu0 0
    %202 = vmatprep.subr.bf16.mxu0 0
    %203 = vmatpush1.bf16.xpose.msra.mxu0 0
    %204 = vmatprep.subr.bf16.mxu0 0
    %205 = vmatpush1.bf16.xpose.msra.mxu0 0
    %206 = vmatprep.subr.bf16.mxu0 0
    %207 = vmatpush1.bf16.xpose.msra.mxu0 0
    %208 = vmatprep.subr.bf16.mxu0 0
    %209 = vmatpush1.bf16.xpose.msra.mxu0 0
    %210 = vmatprep.subr.bf16.mxu0 0
    %211 = vmatpush1.bf16.xpose.msra.mxu0 0
    %212 = vmatprep.mubr.bf16.mxu0 0
    %213 = vmatmul.mubr.bf16.gmra.mrb[0].mxu0 %v179
    %v214 = vpop.f32.mrb[0].mxu0
    %v215 = vadd.f32 0.0, %v214
    %v216 = vpop.f32.mrb[0].mxu0
    %v217 = vpop.f32.mrb[0].mxu0
    %v218 = vpop.f32.mrb[0].mxu0
    %219 = vdwg.mxu0
    %s220 = smul.u32 0, 32
    %v221 = vlaneseq
    %v222 = vand.u32 %v221, 127
    %v223 = vstv %s220
    %v224 = vadd.s32 %v223, %v222
    %vm225 = vcmp.lt.s32.totalorder %v224, 32
    %v226 = vsel %vm225, %v215, -inf
    %v227 = vld [vmem:[#allocation2] sm:$0xff]
    %vm228 = vcmask 261120
    %v229 = vsel %vm228, %v226, -inf
    %230 = vmax.xlane.f32.xlu0 %v229
    %v231 = vpop.xlane.xlu0 %230
    %v232 = vmax.f32 %v227, %v231
    %v233 = vsub.f32 %v227, %v232
    %v234 = vmul.f32 %v233, 1.442695
    %v235 = vpow.pop %v234
    %v236 = vld [vmem:[#allocation3] sm:$0xff]
    %v237 = vmul.f32 %v235, %v236
    %239 = vset.pattern.permute.xlu0 0
    %240 = vperm.xlu0 %239, %v232
    %v241 = vpop.permute.xlu0 %240
    %v243 = vsub.f32 %v226, %v241
    %v244 = vmul.f32 %v243, 1.442695
    %v245 = vpow.pop %v244
    %v246 = vsel %vm228, %v245, 0.0
    %247 = vadd.xlane.f32.xlu0 %v246
    %v248 = vpop.xlane.xlu0 %247
    %v249 = vadd.f32 %v237, %v248
    %vm250 = vcmask 7168
    %251 = vst.msk [vmem:[#allocation3] sm:$0xff] %vm250, %v249
    %252 = vst.msk [vmem:[#allocation2] sm:$0xff] %vm250, %v232
    // Predicated region
    $region34: #{tpu_custom_call.1} parent=1 // pred_check
      %p253 = pneg %p55
    $region35: #{tpu_custom_call.1} parent=1 // pred_check_branch
      %255 = sbr.rel (%p253) target = $region37
    $region36: #{tpu_custom_call.1} parent=1 // pred_region
      %v256 = vld [vmem:[#allocation2] sm:$0xff]
      %v257 = vld [vmem:[#allocation3] sm:$0xff]
      %v258 = vlog2.pop %v257
      %v259 = vmul.f32 %v258, 0.6931472
      %v260 = vadd.f32 %v256, %v259
      %v261 = vld [vmem:[#allocation4] sm:$0xff]
      %v262 = vsub.f32 %v260, %v261
      %263 = vst.msk [vmem:[%s4] sm:$0xff] %vm250, %v262
    $region37: #{tpu_custom_call.1} parent=1 // pred_fallthru
      _
    // Predicated region
    $region38: #{tpu_custom_call.1} parent=1 // pred_check
      _
    $region39: #{tpu_custom_call.1} parent=1 // pred_check_branch
      %265 = sbr.rel (0) target = $region41
    $region40: #{tpu_custom_call.1} parent=1 // pred_region
      _
    $region41: #{tpu_custom_call.1} parent=1 // pred_fallthru
      _
    // Predicated region
    $region42: #{tpu_custom_call.1} parent=1 // pred_check
      _
    $region43: #{tpu_custom_call.1} parent=1 // pred_check_branch
      %267 = sbr.rel (0) target = $region45
    $region44: #{tpu_custom_call.1} parent=1 // pred_region
      _
    $region45: #{tpu_custom_call.1} parent=1 // pred_fallthru
      _
    %268 = vsyncpa [#allocation7], 1
    %269 = vsyncpa [#allocation9], 1

</llo_original>
